<compile_context>
chip_gen: v7x
topology: tpu7x:2x2x1
jax: 0.10.0
libtpu: 0.0.40
codegen_flags: <defaults>
</compile_context>

<pallas_src>
import jax
import jax.numpy as jnp
from jax.experimental import pallas as pl
from jax.experimental.pallas import tpu as pltpu

# ---------------- module config (consistent with MLP(n_embd, dropout)) -------
N_EMBD = 32
HIDDEN = 4 * N_EMBD          # 128 -> lane-dense intermediate
DROPOUT = 0.0                # TODO(synk): dropout is identity (inference); fuse a pltpu PRNG mask for training

ROW_BLOCK = 512              # M tile (sweep 256/512/1024); multiple of 8, ~0.4 MiB VMEM per tile set
MATMUL_DTYPE = jnp.bfloat16  # MXU input dtype; accumulation stays f32


# ---------------- fused MLP kernel --------------------------------------------
def _mlp_kernel(x_ref, w1_ref, b1_ref, w2_ref, b2_ref, o_ref):
    x = x_ref[...]                                               # (TM, C)
    # Linear 1 (bf16 operands, f32 accumulate) + bias + ReLU (f32 elementwise)
    h = jnp.dot(x.astype(MATMUL_DTYPE), w1_ref[...].astype(MATMUL_DTYPE),
                preferred_element_type=jnp.float32)
    h = jnp.maximum(h + b1_ref[...], 0.0)                        # (TM, H), f32
    # Linear 2 (bf16 operands, f32 accumulate) + bias
    y = jnp.dot(h.astype(MATMUL_DTYPE), w2_ref[...].astype(MATMUL_DTYPE),
                preferred_element_type=jnp.float32)
    y = y + b2_ref[...]
    # TODO(synk): for training with DROPOUT > 0, fuse the mask here via
    # pltpu.prng_seed + pltpu.prng_random_bits instead of a separate XLA op.
    o_ref[...] = y.astype(o_ref.dtype)


# ---------------- wrapper -----------------------------------------------------
def _pick_row_tile(m):
    # Single block covering everything (block dim == full dim is always legal),
    # otherwise a sublane-aligned ROW_BLOCK tile; Pallas masks the ragged tail.
    return m if m <= ROW_BLOCK else ROW_BLOCK


def mlp_forward(x, params):
    """relu(x @ w1 + b1) @ w2 + b2 over the last dim of x (any leading dims)."""
    orig_shape = x.shape
    C = orig_shape[-1]
    m = 1
    for d in orig_shape[:-1]:
        m *= d
    x2 = x.reshape(m, C)                      # collapse batch/seq -> big M dim

    w1, b1, w2, b2 = params["w1"], params["b1"], params["w2"], params["b2"]
    H = w1.shape[1]

    tm = _pick_row_tile(m)
    grid = (pl.cdiv(m, tm),)                  # no pre-padding; tail block is masked

    out = pl.pallas_call(
        _mlp_kernel,
        out_shape=jax.ShapeDtypeStruct((m, C), x.dtype),
        grid=grid,
        in_specs=[
            pl.BlockSpec((tm, C), lambda i: (i, 0)),   # activations, tiled by rows
            pl.BlockSpec((C, H), lambda i: (0, 0)),    # w1 (VMEM-resident, DMA'd once)
            pl.BlockSpec((1, H), lambda i: (0, 0)),    # b1
            pl.BlockSpec((H, C), lambda i: (0, 0)),    # w2
            pl.BlockSpec((1, C), lambda i: (0, 0)),    # b2
        ],
        out_specs=pl.BlockSpec((tm, C), lambda i: (i, 0)),
        compiler_params=pltpu.CompilerParams(dimension_semantics=("parallel",)),
    )(x2, w1, b1, w2, b2)

    return out.reshape(orig_shape)


# ---------------- parameter init ----------------------------------------------
def init_params(key):
    k1, k2 = jax.random.split(key)
    return {
        "w1": 0.02 * jax.random.normal(k1, (N_EMBD, HIDDEN), jnp.float32),
        "b1": jnp.zeros((1, HIDDEN), jnp.float32),
        "w2": 0.02 * jax.random.normal(k2, (HIDDEN, N_EMBD), jnp.float32),
        "b2": jnp.zeros((1, N_EMBD), jnp.float32),
    }


# ---------------- pure-JAX reference (same bf16-operand / f32-accum math) -----
def _ref_forward(x, p):
    h = jnp.dot(x.astype(MATMUL_DTYPE), p["w1"].astype(MATMUL_DTYPE),
                preferred_element_type=jnp.float32) + p["b1"]
    h = jnp.maximum(h, 0.0)
    y = jnp.dot(h.astype(MATMUL_DTYPE), p["w2"].astype(MATMUL_DTYPE),
                preferred_element_type=jnp.float32) + p["b2"]
    return y                                  # dropout(p=0 / eval) is identity


if __name__ == "__main__":
    key = jax.random.PRNGKey(0)
    pkey, xkey1, xkey2 = jax.random.split(key, 3)
    params = init_params(pkey)

    # Primary small test: x is (B, T, n_embd) = (2, 8, 32) -> single block path.
    B, T = 2, 8
    x = jax.random.normal(xkey1, (B, T, N_EMBD), jnp.float32)
    y = jax.block_until_ready(mlp_forward(x, params))
    assert y.shape == (B, T, N_EMBD)
    ref = jax.block_until_ready(_ref_forward(x, params))
    assert jnp.allclose(y, ref, atol=1e-4, rtol=1e-4), "mismatch vs reference (small)"

    # Secondary test exercising the multi-block grid + masked ragged tail
    # (m = 2*523 = 1046 rows -> grid of 3 blocks of 512 with a 22-row tail).
    B2, T2 = 2, 523
    x2 = jax.random.normal(xkey2, (B2, T2, N_EMBD), jnp.float32)
    y2 = jax.block_until_ready(mlp_forward(x2, params))
    ref2 = jax.block_until_ready(_ref_forward(x2, params))
    assert y2.shape == (B2, T2, N_EMBD)
    assert jnp.allclose(y2, ref2, atol=1e-4, rtol=1e-4), "mismatch vs reference (ragged)"

    print("KERNEL_OK")
</pallas_src>

<mosaic_0001>
module attributes {stable_mosaic.version = 11 : i64} {
  func.func @_mlp_kernel(%arg0: i32, %arg1: memref<16x32xf32, #tpu.memory_space<vmem>>, %arg2: memref<32x128xf32, #tpu.memory_space<vmem>>, %arg3: memref<1x128xf32, #tpu.memory_space<vmem>>, %arg4: memref<128x32xf32, #tpu.memory_space<vmem>>, %arg5: memref<1x32xf32, #tpu.memory_space<vmem>>, %arg6: memref<16x32xf32, #tpu.memory_space<vmem>>) attributes {dimension_semantics = [#tpu.dimension_semantics<parallel>], iteration_bounds = array<i64: 1>, scalar_prefetch = 0 : i64, scratch_operands = 0 : i64, tpu.core_type = #tpu.core_type<tc>, window_params = [{transform_indices = @transform_0, window_bounds = array<i64: 16, 32>}, {pipeline_mode = #tpu.pipeline_mode<synchronous>, transform_indices = @transform_1, window_bounds = array<i64: 32, 128>}, {pipeline_mode = #tpu.pipeline_mode<synchronous>, transform_indices = @transform_2, window_bounds = array<i64: 1, 128>}, {pipeline_mode = #tpu.pipeline_mode<synchronous>, transform_indices = @transform_3, window_bounds = array<i64: 128, 32>}, {pipeline_mode = #tpu.pipeline_mode<synchronous>, transform_indices = @transform_4, window_bounds = array<i64: 1, 32>}, {transform_indices = @transform_5, window_bounds = array<i64: 16, 32>}]} {
    %c0 = arith.constant 0 : index
    %c0_0 = arith.constant 0 : index
    %0 = vector.load %arg1[%c0, %c0_0] : memref<16x32xf32, #tpu.memory_space<vmem>>, vector<16x32xf32>
    %1 = arith.truncf %0 : vector<16x32xf32> to vector<16x32xbf16>
    %c0_1 = arith.constant 0 : index
    %c0_2 = arith.constant 0 : index
    %2 = vector.load %arg2[%c0_1, %c0_2] : memref<32x128xf32, #tpu.memory_space<vmem>>, vector<32x128xf32>
    %3 = arith.truncf %2 : vector<32x128xf32> to vector<32x128xbf16>
    %cst = arith.constant dense<0.000000e+00> : vector<16x128xf32>
    %4 = tpu.matmul %1, %3, %cst {dimension_numbers = #tpu.dot_dimension_numbers<[1], [0], [0], [1], [0, 0, 1, 1], [], []>} : vector<16x32xbf16>, vector<32x128xbf16>, vector<16x128xf32> -> vector<16x128xf32>
    %c0_3 = arith.constant 0 : index
    %c0_4 = arith.constant 0 : index
    %5 = vector.load %arg3[%c0_3, %c0_4] : memref<1x128xf32, #tpu.memory_space<vmem>>, vector<1x128xf32>
    %6 = vector.broadcast %5 : vector<1x128xf32> to vector<16x128xf32>
    %7 = arith.addf %4, %6 : vector<16x128xf32>
    %cst_5 = arith.constant 0.000000e+00 : f32
    %8 = vector.broadcast %cst_5 : f32 to vector<16x128xf32>
    %9 = arith.maximumf %7, %8 : vector<16x128xf32>
    %10 = arith.truncf %9 : vector<16x128xf32> to vector<16x128xbf16>
    %c0_6 = arith.constant 0 : index
    %c0_7 = arith.constant 0 : index
    %11 = vector.load %arg4[%c0_6, %c0_7] : memref<128x32xf32, #tpu.memory_space<vmem>>, vector<128x32xf32>
    %12 = arith.truncf %11 : vector<128x32xf32> to vector<128x32xbf16>
    %cst_8 = arith.constant dense<0.000000e+00> : vector<16x32xf32>
    %13 = tpu.matmul %10, %12, %cst_8 {dimension_numbers = #tpu.dot_dimension_numbers<[1], [0], [0], [1], [0, 0, 1, 1], [], []>} : vector<16x128xbf16>, vector<128x32xbf16>, vector<16x32xf32> -> vector<16x32xf32>
    %c0_9 = arith.constant 0 : index
    %c0_10 = arith.constant 0 : index
    %14 = vector.load %arg5[%c0_9, %c0_10] : memref<1x32xf32, #tpu.memory_space<vmem>>, vector<1x32xf32>
    %15 = vector.broadcast %14 : vector<1x32xf32> to vector<16x32xf32>
    %16 = arith.addf %13, %15 : vector<16x32xf32>
    %c0_11 = arith.constant 0 : index
    %c0_12 = arith.constant 0 : index
    %17 = vector.load %arg6[%c0_11, %c0_12] : memref<16x32xf32, #tpu.memory_space<vmem>>, vector<16x32xf32>
    tpu.vector_store %arg6[%c0_11, %c0_12], %16 {strides = array<i32>} : memref<16x32xf32, #tpu.memory_space<vmem>>, vector<16x32xf32>,
    return
  }
  func.func @transform_0(%arg0: i32) -> (i32, i32) {
    %c0_i32 = arith.constant 0 : i32
    %c0_i32_0 = arith.constant 0 : i32
    return %arg0, %c0_i32 : i32, i32
  }
  func.func @transform_1(%arg0: i32) -> (i32, i32) {
    %c0_i32 = arith.constant 0 : i32
    %c0_i32_0 = arith.constant 0 : i32
    %c0_i32_1 = arith.constant 0 : i32
    return %c0_i32, %c0_i32_0 : i32, i32
  }
  func.func @transform_2(%arg0: i32) -> (i32, i32) {
    %c0_i32 = arith.constant 0 : i32
    %c0_i32_0 = arith.constant 0 : i32
    %c0_i32_1 = arith.constant 0 : i32
    return %c0_i32, %c0_i32_0 : i32, i32
  }
  func.func @transform_3(%arg0: i32) -> (i32, i32) {
    %c0_i32 = arith.constant 0 : i32
    %c0_i32_0 = arith.constant 0 : i32
    %c0_i32_1 = arith.constant 0 : i32
    return %c0_i32, %c0_i32_0 : i32, i32
  }
  func.func @transform_4(%arg0: i32) -> (i32, i32) {
    %c0_i32 = arith.constant 0 : i32
    %c0_i32_0 = arith.constant 0 : i32
    %c0_i32_1 = arith.constant 0 : i32
    return %c0_i32, %c0_i32_0 : i32, i32
  }
  func.func @transform_5(%arg0: i32) -> (i32, i32) {
    %c0_i32 = arith.constant 0 : i32
    %c0_i32_0 = arith.constant 0 : i32
    return %arg0, %c0_i32 : i32, i32
  }
}

</mosaic_0001>

<llo_original>
// kernel: tpu_custom_call.1
$region0: #{tpu_custom_call.1}
  #allocation0 [shape = 'u32[]', space=smem, size = 0x4, offset = 0x4, fixed_abs, tag = 'smem constant byte address 0x4 - core index']
  #allocation1 [shape = 'u32[144,128]{1,0:T(1,128)}', space=vmem, size = 0x12000, scoped, tag = 'internal scratch']
  %s0 = inlined_call_operand.vmem [shape: f32[16,32], index: 0, kind: input, shape index: {}]
  %s1 = inlined_call_operand.vmem [shape: f32[32,128], index: 1, kind: input, shape index: {}]
  %s2 = inlined_call_operand.vmem [shape: f32[1,128], index: 2, kind: input, shape index: {}]
  %s3 = inlined_call_operand.vmem [shape: f32[128,32], index: 3, kind: input, shape index: {}]
  %s4 = inlined_call_operand.vmem [shape: f32[1,32], index: 4, kind: input, shape index: {}]
  %s5 = inlined_call_operand.hbm [shape: f32[16,32], index: 5, kind: output, shape index: {}]
  %s6 = sld [smem:[#allocation0]]
  $region30: #{tpu_custom_call.1} parent=0
    _
  %s8 = ssub.s32 1, %s6
  %s9 = scalar_select 0, %s8, %s6
  $region1: #{tpu_custom_call.1} parent=0
    #allocation2 [shape = 'u8[8192]{0}', space=vmem, size = 0x2000, scoped, tag = 'output window, operand 0, single buffered']
    #allocation3 [shape = 's32[1]{0}', space=sflag, size = 0x4, scoped, tag = 'scoped memory for tpu_custom_call.1']
    %10 = vsyncpa [#allocation3], 0
    // Predicated region
    $region2: #{tpu_custom_call.1} parent=1 // pred_check
      _
    $region3: #{tpu_custom_call.1} parent=1 // pred_check_branch
      %12 = sbr.rel (0) target = $region5
    $region4: #{tpu_custom_call.1} parent=1 // pred_region
      _
    $region5: #{tpu_custom_call.1} parent=1 // pred_fallthru
      _
    // Predicated region
    $region6: #{tpu_custom_call.1} parent=1 // pred_check
      _
    $region7: #{tpu_custom_call.1} parent=1 // pred_check_branch
      %14 = sbr.rel (0) target = $region9
    $region8: #{tpu_custom_call.1} parent=1 // pred_region
      _
    $region9: #{tpu_custom_call.1} parent=1 // pred_fallthru
      _
    // Predicated region
    $region10: #{tpu_custom_call.1} parent=1 // pred_check
      _
    $region11: #{tpu_custom_call.1} parent=1 // pred_check_branch
      %16 = sbr.rel (0) target = $region13
    $region12: #{tpu_custom_call.1} parent=1 // pred_region
      _
    $region13: #{tpu_custom_call.1} parent=1 // pred_fallthru
      _
    // Predicated region
    $region14: #{tpu_custom_call.1} parent=1 // pred_check
      _
    $region15: #{tpu_custom_call.1} parent=1 // pred_check_branch
      %18 = sbr.rel (0) target = $region17
    $region16: #{tpu_custom_call.1} parent=1 // pred_region
      _
    $region17: #{tpu_custom_call.1} parent=1 // pred_fallthru
      _
    // Predicated region
    $region18: #{tpu_custom_call.1} parent=1 // pred_check
      _
    $region19: #{tpu_custom_call.1} parent=1 // pred_check_branch
      %20 = sbr.rel (0) target = $region21
    $region20: #{tpu_custom_call.1} parent=1 // pred_region
      _
    $region21: #{tpu_custom_call.1} parent=1 // pred_fallthru
      _
    %v22 = vld [vmem:[%s0] sm:$0xff]
    %v23 = vld [vmem:[%s0 + $0x8] sm:$0xff]
    %v24 = vpack.c.bf16 %v23, %v22
    %v25 = vld [vmem:[%s1] sm:$0xff]
    %v26 = vld [vmem:[%s1 + $0x8] sm:$0xff]
    %v27 = vld [vmem:[%s1 + $0x10] sm:$0xff]
    %v28 = vld [vmem:[%s1 + $0x18] sm:$0xff]
    %v29 = vpack.c.bf16 %v26, %v25
    %v30 = vpack.c.bf16 %v28, %v27
    %v31 = vld [vmem:[%s2] sm:$0x1]
    %v33 = vlaneseq
    %v34 = vshrl.u32 %v33, 7
    %v35 = vsub.s32 0, %v34
    %v36 = vrot.slane %v31, %v35
    %vm38 = vcmask 261120
    %v40 = vsel %vm38, %v24, 0
    %42 = vmatprep.subr.bf16.mxu0 0
    %43 = vmatpush1.bf16.msra.mxu0 %v29
    %44 = vmatprep.subr.bf16.mxu0 0
    %45 = vmatpush1.bf16.msra.mxu0 %v30
    %46 = vmatprep.subr.bf16.mxu0 0
    %47 = vmatpush1.bf16.msra.mxu0 0
    %48 = vmatprep.subr.bf16.mxu0 0
    %49 = vmatpush1.bf16.msra.mxu0 0
    %50 = vmatprep.subr.bf16.mxu0 0
    %51 = vmatpush1.bf16.msra.mxu0 0
    %52 = vmatprep.subr.bf16.mxu0 0
    %53 = vmatpush1.bf16.msra.mxu0 0
    %54 = vmatprep.subr.bf16.mxu0 0
    %55 = vmatpush1.bf16.msra.mxu0 0
    %56 = vmatprep.subr.bf16.mxu0 0
    %57 = vmatpush1.bf16.msra.mxu0 0
    %58 = vmatprep.subr.bf16.mxu0 0
    %59 = vmatpush1.bf16.msra.mxu0 0
    %60 = vmatprep.subr.bf16.mxu0 0
    %61 = vmatpush1.bf16.msra.mxu0 0
    %62 = vmatprep.subr.bf16.mxu0 0
    %63 = vmatpush1.bf16.msra.mxu0 0
    %64 = vmatprep.subr.bf16.mxu0 0
    %65 = vmatpush1.bf16.msra.mxu0 0
    %66 = vmatprep.subr.bf16.mxu0 0
    %67 = vmatpush1.bf16.msra.mxu0 0
    %68 = vmatprep.subr.bf16.mxu0 0
    %69 = vmatpush1.bf16.msra.mxu0 0
    %70 = vmatprep.subr.bf16.mxu0 0
    %71 = vmatpush1.bf16.msra.mxu0 0
    %72 = vmatprep.subr.bf16.mxu0 0
    %73 = vmatpush1.bf16.msra.mxu0 0
    %74 = vmatprep.mubr.bf16.mxu0 0
    %75 = vmatmul.mubr.bf16.gmra.mrb[0].mxu0 %v40
    %v76 = vpop.f32.mrb[0].mxu0
    %v77 = vadd.f32 %v36, %v76
    %v78 = vpop.f32.mrb[0].mxu0
    %v79 = vpop.f32.mrb[0].mxu0
    %v80 = vadd.f32 %v36, %v79
    %v81 = vpop.f32.mrb[0].mxu0
    %82 = vdwg.mxu0
    %v83 = vmax.f32 %v77, 0.0
    %v84 = vmax.f32 %v80, 0.0
    %v85 = vpack.c.bf16 %v84, %v83
    %v86 = vld [vmem:[%s3] sm:$0xff]
    %v87 = vld [vmem:[%s3 + $0x8] sm:$0xff]
    %v88 = vld [vmem:[%s3 + $0x10] sm:$0xff]
    %v89 = vld [vmem:[%s3 + $0x18] sm:$0xff]
    %v90 = vld [vmem:[%s3 + $0x20] sm:$0xff]
    %v91 = vld [vmem:[%s3 + $0x28] sm:$0xff]
    %v92 = vld [vmem:[%s3 + $0x30] sm:$0xff]
    %v93 = vld [vmem:[%s3 + $0x38] sm:$0xff]
    %v94 = vld [vmem:[%s3 + $0x40] sm:$0xff]
    %v95 = vld [vmem:[%s3 + $0x48] sm:$0xff]
    %v96 = vld [vmem:[%s3 + $0x50] sm:$0xff]
    %v97 = vld [vmem:[%s3 + $0x58] sm:$0xff]
    %v98 = vld [vmem:[%s3 + $0x60] sm:$0xff]
    %v99 = vld [vmem:[%s3 + $0x68] sm:$0xff]
    %v100 = vld [vmem:[%s3 + $0x70] sm:$0xff]
    %v101 = vld [vmem:[%s3 + $0x78] sm:$0xff]
    %v102 = vpack.c.bf16 %v87, %v86
    %v103 = vpack.c.bf16 %v89, %v88
    %v104 = vpack.c.bf16 %v91, %v90
    %v105 = vpack.c.bf16 %v93, %v92
    %v106 = vpack.c.bf16 %v95, %v94
    %v107 = vpack.c.bf16 %v97, %v96
    %v108 = vpack.c.bf16 %v99, %v98
    %v109 = vpack.c.bf16 %v101, %v100
    %v110 = vld [vmem:[%s4] sm:$0x1]
    %v112 = vlaneseq
    %v113 = vshrl.u32 %v112, 7
    %v114 = vsub.s32 0, %v113
    %v115 = vrot.slane %v110, %v114
    %117 = vmatprep.subr.bf16.mxu0 0
    %118 = vmatpush1.bf16.msra.mxu0 %v102
    %119 = vmatprep.subr.bf16.mxu0 0
    %120 = vmatpush1.bf16.msra.mxu0 %v103
    %121 = vmatprep.subr.bf16.mxu0 0
    %122 = vmatpush1.bf16.msra.mxu0 %v104
    %123 = vmatprep.subr.bf16.mxu0 0
    %124 = vmatpush1.bf16.msra.mxu0 %v105
    %125 = vmatprep.subr.bf16.mxu0 0
    %126 = vmatpush1.bf16.msra.mxu0 %v106
    %127 = vmatprep.subr.bf16.mxu0 0
    %128 = vmatpush1.bf16.msra.mxu0 %v107
    %129 = vmatprep.subr.bf16.mxu0 0
    %130 = vmatpush1.bf16.msra.mxu0 %v108
    %131 = vmatprep.subr.bf16.mxu0 0
    %132 = vmatpush1.bf16.msra.mxu0 %v109
    %133 = vmatprep.subr.bf16.mxu0 0
    %134 = vmatpush1.bf16.msra.mxu0 0
    %135 = vmatprep.subr.bf16.mxu0 0
    %136 = vmatpush1.bf16.msra.mxu0 0
    %137 = vmatprep.subr.bf16.mxu0 0
    %138 = vmatpush1.bf16.msra.mxu0 0
    %139 = vmatprep.subr.bf16.mxu0 0
    %140 = vmatpush1.bf16.msra.mxu0 0
    %141 = vmatprep.subr.bf16.mxu0 0
    %142 = vmatpush1.bf16.msra.mxu0 0
    %143 = vmatprep.subr.bf16.mxu0 0
    %144 = vmatpush1.bf16.msra.mxu0 0
    %145 = vmatprep.subr.bf16.mxu0 0
    %146 = vmatpush1.bf16.msra.mxu0 0
    %147 = vmatprep.subr.bf16.mxu0 0
    %148 = vmatpush1.bf16.msra.mxu0 0
    %149 = vmatprep.mubr.bf16.mxu0 0
    %150 = vmatmul.mubr.bf16.gmra.mrb[0].mxu0 %v85
    %v151 = vpop.f32.mrb[0].mxu0
    %v152 = vadd.f32 %v115, %v151
    %v153 = vpop.f32.mrb[0].mxu0
    %v154 = vpop.f32.mrb[0].mxu0
    %v155 = vadd.f32 %v115, %v154
    %v156 = vpop.f32.mrb[0].mxu0
    %157 = vdwg.mxu0
    %158 = vst.msk [vmem:[#allocation2] sm:$0xff] %vm38, %v152
    %159 = vst.msk [vmem:[#allocation2 + $0x8] sm:$0xff] %vm38, %v155
    // Predicated region
    $region22: #{tpu_custom_call.1} parent=1 // pred_check
      _
    $region23: #{tpu_custom_call.1} parent=1 // pred_check_branch
      %161 = sbr.rel (0) target = $region25
    $region24: #{tpu_custom_call.1} parent=1 // pred_region
      %s163 = ssub.s32 256, 256
      %164 = vsyncadd [#allocation3], %s163
      %s165 = sshll.u32 [#allocation2], 4
      %s166 = int_to_ptr.vmem [resolvable:$true] %s165
      %171 = dma.vmem_to_hbm [thread:$0]  %s166, 256, %s5, [#allocation3], 128, 128, 8
    $region25: #{tpu_custom_call.1} parent=1 // pred_fallthru
      _
    // Predicated region
    $region26: #{tpu_custom_call.1} parent=1 // pred_check
      _
    $region27: #{tpu_custom_call.1} parent=1 // pred_check_branch
      %173 = sbr.rel (0) target = $region29
    $region28: #{tpu_custom_call.1} parent=1 // pred_region
      %174 = dma.done [#allocation3], 256
    $region29: #{tpu_custom_call.1} parent=1 // pred_fallthru
      _
    %175 = vsyncpa [#allocation3], 1

</llo_original>
